<compile_context>
chip_gen: v7x
topology: tpu7x:2x2x1
jax: 0.10.0
libtpu: 0.0.40
codegen_flags: <defaults>
</compile_context>

<pallas_src>
import functools

import jax
import jax.numpy as jnp
from jax import lax
from jax.experimental import pallas as pl
from jax.experimental.pallas import tpu as pltpu

LANES = 128


def _sublane_multiple(dtype):
    itemsize = jnp.dtype(dtype).itemsize
    if itemsize >= 4:
        return 8
    if itemsize == 2:
        return 16
    return 32


def _ccc_kernel(n_ref, off_ref, p_ref, g_ref, out_ref,
                acc_p, acc_g, acc_pp, acc_gg, acc_pg, *, blk, tail_rows):
    # ---- init accumulators on the first grid step --------------------------
    @pl.when(pl.program_id(0) == 0)
    def _():
        acc_p[...] = jnp.zeros_like(acc_p)
        acc_g[...] = jnp.zeros_like(acc_g)
        acc_pp[...] = jnp.zeros_like(acc_pp)
        acc_gg[...] = jnp.zeros_like(acc_gg)
        acc_pg[...] = jnp.zeros_like(acc_pg)

    # ---- per-tile shifted raw moments ---------------------------------------
    off_p = off_ref[0]
    off_g = off_ref[1]
    p = p_ref[...].astype(jnp.float32) - off_p   # (blk, 128)
    g = g_ref[...].astype(jnp.float32) - off_g

    def _accumulate(pv, gv):
        # Collapse blk rows down to 8 sublanes with plain vreg adds only.
        def rsum(x):
            return jnp.sum(x.reshape(blk // 8, 8, LANES), axis=0)
        acc_p[...] += rsum(pv)
        acc_g[...] += rsum(gv)
        acc_pp[...] += rsum(pv * pv)
        acc_gg[...] += rsum(gv * gv)
        acc_pg[...] += rsum(pv * gv)

    if tail_rows == 0:
        # Every grid block is fully in-bounds: no masking needed anywhere.
        _accumulate(p, g)
    else:
        # Only the last grid block is partial; mask its out-of-bounds rows.
        is_last = pl.program_id(0) == pl.num_programs(0) - 1

        @pl.when(jnp.logical_not(is_last))
        def _():
            _accumulate(p, g)

        @pl.when(is_last)
        def _():
            rid = lax.broadcasted_iota(jnp.int32, (blk, LANES), 0)
            ok = rid < tail_rows
            _accumulate(jnp.where(ok, p, 0.0), jnp.where(ok, g, 0.0))

    # ---- finalize: one cross-sublane/lane reduce per moment + CCC epilogue --
    @pl.when(pl.program_id(0) == pl.num_programs(0) - 1)
    def _():
        sp = jnp.sum(acc_p[...])
        sg = jnp.sum(acc_g[...])
        spp = jnp.sum(acc_pp[...])
        sgg = jnp.sum(acc_gg[...])
        spg = jnp.sum(acc_pg[...])

        n_f = n_ref[0].astype(jnp.float32)
        inv_n = 1.0 / n_f
        inv_nm1 = 1.0 / (n_f - 1.0)

        # Shift-invariant centered second moments from the shifted raw sums.
        ss_p = spp - sp * sp * inv_n          # sum((p - mean_p)^2)
        ss_g = sgg - sg * sg * inv_n          # sum((g - mean_g)^2)
        cov = spg - sp * sg * inv_n           # sum((p - mean_p)(g - mean_g))

        var_p = ss_p * inv_nm1
        var_g = ss_g * inv_nm1
        sd_p = jnp.sqrt(var_p)
        sd_g = jnp.sqrt(var_g)
        # Literal reference formula (keeps NaN behavior for degenerate cases).
        cor = cov / (jnp.sqrt(ss_p) * jnp.sqrt(ss_g))
        mean_diff = (sg - sp) * inv_n + (off_g - off_p)   # mean_gt - mean_pred

        numerator = 2.0 * cor * sd_g * sd_p
        denominator = var_g + var_p + mean_diff * mean_diff
        out_ref[...] = jnp.full((1, 1), 1.0 - numerator / denominator,
                                dtype=jnp.float32)


def ccc_loss(prediction, ground_truth, *, block_rows=2048):
    """CCC loss for 1-D prediction / ground_truth of shape (N,)."""
    assert prediction.shape == ground_truth.shape
    assert prediction.ndim == 1
    n = prediction.shape[0]

    # Dtype-aware sublane rounding (f32: 8, bf16: 16, int8/fp8: 32 rows).
    sub = max(_sublane_multiple(prediction.dtype),
              _sublane_multiple(ground_truth.dtype))
    chunk = sub * LANES
    rows_padded = pl.cdiv(n, chunk) * sub          # multiple of `sub`, minimal
    pad = rows_padded * LANES - n                  # < sub*128 elements

    blk = min(block_rows, rows_padded)
    blk = max(sub, (blk // sub) * sub)
    num_tiles = pl.cdiv(rows_padded, blk)
    tail_rows = rows_padded % blk                  # 0 => every block is full

    # Pilot offsets (first element of each array) for numerically stable
    # shifted raw moments; also used as the pad value so padded entries
    # contribute exactly zero after the in-kernel shift.
    off_p = prediction[0]
    off_g = ground_truth[0]
    if pad:
        p1 = jnp.concatenate(
            [prediction, jnp.full((pad,), off_p, prediction.dtype)])
        g1 = jnp.concatenate(
            [ground_truth, jnp.full((pad,), off_g, ground_truth.dtype)])
    else:
        p1, g1 = prediction, ground_truth
    p2 = p1.reshape(rows_padded, LANES)
    g2 = g1.reshape(rows_padded, LANES)

    n_arr = jnp.array([n], dtype=jnp.int32)
    offs = jnp.stack([off_p, off_g]).astype(jnp.float32)

    # VMEM budget: 2 inputs x 2 pipeline buffers x block bytes. Only raise the
    # scoped-VMEM limit if a caller-requested block would exceed v5e's 16 MiB
    # default; the 2048-row default needs ~4 MiB and fits everywhere.
    itemsize = max(jnp.dtype(prediction.dtype).itemsize,
                   jnp.dtype(ground_truth.dtype).itemsize)
    in_buf_bytes = 2 * 2 * blk * LANES * itemsize
    cp_kwargs = dict(dimension_semantics=("arbitrary",))
    if in_buf_bytes > 12 * (1 << 20):
        cp_kwargs["vmem_limit_bytes"] = min(in_buf_bytes + (8 << 20), 64 << 20)

    kernel = functools.partial(_ccc_kernel, blk=blk, tail_rows=tail_rows)
    out = pl.pallas_call(
        kernel,
        out_shape=jax.ShapeDtypeStruct((1, 1), jnp.float32),
        grid_spec=pltpu.PrefetchScalarGridSpec(
            num_scalar_prefetch=1,                 # n (SMEM int32)
            grid=(num_tiles,),
            in_specs=[
                pl.BlockSpec(memory_space=pltpu.MemorySpace.SMEM),  # offsets
                pl.BlockSpec((blk, LANES), lambda i, n_ref: (i, 0)),
                pl.BlockSpec((blk, LANES), lambda i, n_ref: (i, 0)),
            ],
            out_specs=pl.BlockSpec((1, 1), lambda i, n_ref: (0, 0)),
            scratch_shapes=[pltpu.VMEM((8, LANES), jnp.float32)
                            for _ in range(5)],
        ),
        compiler_params=pltpu.CompilerParams(**cp_kwargs),
    )(n_arr, offs, p2, g2)
    return out[0, 0]


def _ccc_loss_ref(prediction, ground_truth):
    """Pure-JAX reference matching the PyTorch module (1-D inputs)."""
    p = prediction.astype(jnp.float32)
    g = ground_truth.astype(jnp.float32)
    mean_g = jnp.mean(g)
    mean_p = jnp.mean(p)
    var_g = jnp.var(g, ddof=1)
    var_p = jnp.var(p, ddof=1)
    v_p = p - mean_p
    v_g = g - mean_g
    cor = jnp.sum(v_p * v_g) / (
        jnp.sqrt(jnp.sum(v_p ** 2)) * jnp.sqrt(jnp.sum(v_g ** 2)))
    sd_g = jnp.std(g, ddof=1)
    sd_p = jnp.std(p, ddof=1)
    numerator = 2 * cor * sd_g * sd_p
    denominator = var_g + var_p + (mean_g - mean_p) ** 2
    return 1 - numerator / denominator


if __name__ == "__main__":
    key = jax.random.PRNGKey(0)
    k1, k2, k3, k4, k5, k6 = jax.random.split(key, 6)

    # Small case (single tile) — typical regression batch size.
    N = 16
    gt = jax.random.normal(k1, (N,), dtype=jnp.float32)
    pr = gt * 0.8 + 0.1 * jax.random.normal(k2, (N,), dtype=jnp.float32)
    loss = ccc_loss(pr, gt)
    jax.block_until_ready(loss)
    ref = _ccc_loss_ref(pr, gt)
    assert jnp.allclose(loss, ref, atol=1e-4, rtol=1e-4), (loss, ref)

    # Multi-tile reduction grid (block_rows=8 -> 2 full tiles); the +100 mean
    # shift exercises the pilot-offset numerical path.
    N2 = 2000
    gt2 = jax.random.normal(k3, (N2,), dtype=jnp.float32) + 100.0
    pr2 = gt2 * 0.7 + 0.2 * jax.random.normal(k4, (N2,), dtype=jnp.float32)
    loss2 = ccc_loss(pr2, gt2, block_rows=8)
    jax.block_until_ready(loss2)
    ref2 = _ccc_loss_ref(pr2, gt2)
    assert jnp.allclose(loss2, ref2, atol=1e-4, rtol=1e-4), (loss2, ref2)

    # Partial last block (rows_padded=24, blk=16 -> tail_rows=8) exercises the
    # in-kernel tail-row mask.
    N3 = 3000
    gt3 = jax.random.normal(k5, (N3,), dtype=jnp.float32) + 0.5
    pr3 = gt3 * 0.9 + 0.3 * jax.random.normal(k6, (N3,), dtype=jnp.float32)
    loss3 = ccc_loss(pr3, gt3, block_rows=16)
    jax.block_until_ready(loss3)
    ref3 = _ccc_loss_ref(pr3, gt3)
    assert jnp.allclose(loss3, ref3, atol=1e-4, rtol=1e-4), (loss3, ref3)

    print("KERNEL_OK")
</pallas_src>

<mosaic_0001>
module attributes {stable_mosaic.version = 11 : i64} {
  func.func @_ccc_kernel(%arg0: i32, %arg1: memref<1xi32, #tpu.memory_space<smem>>, %arg2: memref<2xf32, #tpu.memory_space<smem>>, %arg3: memref<8x128xf32, #tpu.memory_space<vmem>>, %arg4: memref<8x128xf32, #tpu.memory_space<vmem>>, %arg5: memref<1x1xf32, #tpu.memory_space<vmem>>, %arg6: memref<8x128xf32, #tpu.memory_space<vmem>>, %arg7: memref<8x128xf32, #tpu.memory_space<vmem>>, %arg8: memref<8x128xf32, #tpu.memory_space<vmem>>, %arg9: memref<8x128xf32, #tpu.memory_space<vmem>>, %arg10: memref<8x128xf32, #tpu.memory_space<vmem>>) attributes {dimension_semantics = [#tpu.dimension_semantics<arbitrary>], iteration_bounds = array<i64: 1>, scalar_prefetch = 1 : i64, scratch_operands = 5 : i64, tpu.core_type = #tpu.core_type<tc>, window_params = [{transform_indices = @transform_0, window_bounds = array<i64: 2>}, {transform_indices = @transform_1, window_bounds = array<i64: 8, 128>}, {transform_indices = @transform_2, window_bounds = array<i64: 8, 128>}, {pipeline_mode = #tpu.pipeline_mode<synchronous>, transform_indices = @transform_3, window_bounds = array<i64: 1, 1>}]} {
    %c0_i32 = arith.constant 0 : i32
    %0 = arith.cmpi eq, %arg0, %c0_i32 : i32
    %1 = arith.extui %0 : i1 to i32
    %c0_i32_0 = arith.constant 0 : i32
    %2 = arith.cmpi ne, %1, %c0_i32_0 : i32
    scf.if %2 {
      %cst_31 = arith.constant 0.000000e+00 : f32
      %42 = vector.broadcast %cst_31 : f32 to vector<8x128xf32>
      %c0_32 = arith.constant 0 : index
      %c0_33 = arith.constant 0 : index
      %43 = vector.load %arg6[%c0_32, %c0_33] : memref<8x128xf32, #tpu.memory_space<vmem>>, vector<8x128xf32>
      tpu.vector_store %arg6[%c0_32, %c0_33], %42 {strides = array<i32>} : memref<8x128xf32, #tpu.memory_space<vmem>>, vector<8x128xf32>,
      %cst_34 = arith.constant 0.000000e+00 : f32
      %44 = vector.broadcast %cst_34 : f32 to vector<8x128xf32>
      %c0_35 = arith.constant 0 : index
      %c0_36 = arith.constant 0 : index
      %45 = vector.load %arg7[%c0_35, %c0_36] : memref<8x128xf32, #tpu.memory_space<vmem>>, vector<8x128xf32>
      tpu.vector_store %arg7[%c0_35, %c0_36], %44 {strides = array<i32>} : memref<8x128xf32, #tpu.memory_space<vmem>>, vector<8x128xf32>,
      %cst_37 = arith.constant 0.000000e+00 : f32
      %46 = vector.broadcast %cst_37 : f32 to vector<8x128xf32>
      %c0_38 = arith.constant 0 : index
      %c0_39 = arith.constant 0 : index
      %47 = vector.load %arg8[%c0_38, %c0_39] : memref<8x128xf32, #tpu.memory_space<vmem>>, vector<8x128xf32>
      tpu.vector_store %arg8[%c0_38, %c0_39], %46 {strides = array<i32>} : memref<8x128xf32, #tpu.memory_space<vmem>>, vector<8x128xf32>,
      %cst_40 = arith.constant 0.000000e+00 : f32
      %48 = vector.broadcast %cst_40 : f32 to vector<8x128xf32>
      %c0_41 = arith.constant 0 : index
      %c0_42 = arith.constant 0 : index
      %49 = vector.load %arg9[%c0_41, %c0_42] : memref<8x128xf32, #tpu.memory_space<vmem>>, vector<8x128xf32>
      tpu.vector_store %arg9[%c0_41, %c0_42], %48 {strides = array<i32>} : memref<8x128xf32, #tpu.memory_space<vmem>>, vector<8x128xf32>,
      %cst_43 = arith.constant 0.000000e+00 : f32
      %50 = vector.broadcast %cst_43 : f32 to vector<8x128xf32>
      %c0_44 = arith.constant 0 : index
      %c0_45 = arith.constant 0 : index
      %51 = vector.load %arg10[%c0_44, %c0_45] : memref<8x128xf32, #tpu.memory_space<vmem>>, vector<8x128xf32>
      tpu.vector_store %arg10[%c0_44, %c0_45], %50 {strides = array<i32>} : memref<8x128xf32, #tpu.memory_space<vmem>>, vector<8x128xf32>,
    } else {
    }
    %c0 = arith.constant 0 : index
    %3 = memref.load %arg2[%c0] : memref<2xf32, #tpu.memory_space<smem>>
    %c1 = arith.constant 1 : index
    %4 = memref.load %arg2[%c1] : memref<2xf32, #tpu.memory_space<smem>>
    %c0_1 = arith.constant 0 : index
    %c0_2 = arith.constant 0 : index
    %5 = vector.load %arg3[%c0_1, %c0_2] : memref<8x128xf32, #tpu.memory_space<vmem>>, vector<8x128xf32>
    %6 = vector.broadcast %3 : f32 to vector<8x128xf32>
    %7 = arith.subf %5, %6 : vector<8x128xf32>
    %c0_3 = arith.constant 0 : index
    %c0_4 = arith.constant 0 : index
    %8 = vector.load %arg4[%c0_3, %c0_4] : memref<8x128xf32, #tpu.memory_space<vmem>>, vector<8x128xf32>
    %9 = vector.broadcast %4 : f32 to vector<8x128xf32>
    %10 = arith.subf %8, %9 : vector<8x128xf32>
    %c0_5 = arith.constant 0 : index
    %c0_6 = arith.constant 0 : index
    %11 = vector.load %arg6[%c0_5, %c0_6] : memref<8x128xf32, #tpu.memory_space<vmem>>, vector<8x128xf32>
    %12 = vector.shape_cast %7 : vector<8x128xf32> to vector<1x8x128xf32>
    %cst = arith.constant dense<0.000000e+00> : vector<8x128xf32>
    %13 = vector.multi_reduction <add>, %12, %cst [0] : vector<1x8x128xf32> to vector<8x128xf32>
    %14 = arith.addf %11, %13 : vector<8x128xf32>
    %c0_7 = arith.constant 0 : index
    %c0_8 = arith.constant 0 : index
    %15 = vector.load %arg6[%c0_7, %c0_8] : memref<8x128xf32, #tpu.memory_space<vmem>>, vector<8x128xf32>
    tpu.vector_store %arg6[%c0_7, %c0_8], %14 {strides = array<i32>} : memref<8x128xf32, #tpu.memory_space<vmem>>, vector<8x128xf32>,
    %c0_9 = arith.constant 0 : index
    %c0_10 = arith.constant 0 : index
    %16 = vector.load %arg7[%c0_9, %c0_10] : memref<8x128xf32, #tpu.memory_space<vmem>>, vector<8x128xf32>
    %17 = vector.shape_cast %10 : vector<8x128xf32> to vector<1x8x128xf32>
    %cst_11 = arith.constant dense<0.000000e+00> : vector<8x128xf32>
    %18 = vector.multi_reduction <add>, %17, %cst_11 [0] : vector<1x8x128xf32> to vector<8x128xf32>
    %19 = arith.addf %16, %18 : vector<8x128xf32>
    %c0_12 = arith.constant 0 : index
    %c0_13 = arith.constant 0 : index
    %20 = vector.load %arg7[%c0_12, %c0_13] : memref<8x128xf32, #tpu.memory_space<vmem>>, vector<8x128xf32>
    tpu.vector_store %arg7[%c0_12, %c0_13], %19 {strides = array<i32>} : memref<8x128xf32, #tpu.memory_space<vmem>>, vector<8x128xf32>,
    %c0_14 = arith.constant 0 : index
    %c0_15 = arith.constant 0 : index
    %21 = vector.load %arg8[%c0_14, %c0_15] : memref<8x128xf32, #tpu.memory_space<vmem>>, vector<8x128xf32>
    %22 = arith.mulf %7, %7 : vector<8x128xf32>
    %23 = vector.shape_cast %22 : vector<8x128xf32> to vector<1x8x128xf32>
    %cst_16 = arith.constant dense<0.000000e+00> : vector<8x128xf32>
    %24 = vector.multi_reduction <add>, %23, %cst_16 [0] : vector<1x8x128xf32> to vector<8x128xf32>
    %25 = arith.addf %21, %24 : vector<8x128xf32>
    %c0_17 = arith.constant 0 : index
    %c0_18 = arith.constant 0 : index
    %26 = vector.load %arg8[%c0_17, %c0_18] : memref<8x128xf32, #tpu.memory_space<vmem>>, vector<8x128xf32>
    tpu.vector_store %arg8[%c0_17, %c0_18], %25 {strides = array<i32>} : memref<8x128xf32, #tpu.memory_space<vmem>>, vector<8x128xf32>,
    %c0_19 = arith.constant 0 : index
    %c0_20 = arith.constant 0 : index
    %27 = vector.load %arg9[%c0_19, %c0_20] : memref<8x128xf32, #tpu.memory_space<vmem>>, vector<8x128xf32>
    %28 = arith.mulf %10, %10 : vector<8x128xf32>
    %29 = vector.shape_cast %28 : vector<8x128xf32> to vector<1x8x128xf32>
    %cst_21 = arith.constant dense<0.000000e+00> : vector<8x128xf32>
    %30 = vector.multi_reduction <add>, %29, %cst_21 [0] : vector<1x8x128xf32> to vector<8x128xf32>
    %31 = arith.addf %27, %30 : vector<8x128xf32>
    %c0_22 = arith.constant 0 : index
    %c0_23 = arith.constant 0 : index
    %32 = vector.load %arg9[%c0_22, %c0_23] : memref<8x128xf32, #tpu.memory_space<vmem>>, vector<8x128xf32>
    tpu.vector_store %arg9[%c0_22, %c0_23], %31 {strides = array<i32>} : memref<8x128xf32, #tpu.memory_space<vmem>>, vector<8x128xf32>,
    %c0_24 = arith.constant 0 : index
    %c0_25 = arith.constant 0 : index
    %33 = vector.load %arg10[%c0_24, %c0_25] : memref<8x128xf32, #tpu.memory_space<vmem>>, vector<8x128xf32>
    %34 = arith.mulf %7, %10 : vector<8x128xf32>
    %35 = vector.shape_cast %34 : vector<8x128xf32> to vector<1x8x128xf32>
    %cst_26 = arith.constant dense<0.000000e+00> : vector<8x128xf32>
    %36 = vector.multi_reduction <add>, %35, %cst_26 [0] : vector<1x8x128xf32> to vector<8x128xf32>
    %37 = arith.addf %33, %36 : vector<8x128xf32>
    %c0_27 = arith.constant 0 : index
    %c0_28 = arith.constant 0 : index
    %38 = vector.load %arg10[%c0_27, %c0_28] : memref<8x128xf32, #tpu.memory_space<vmem>>, vector<8x128xf32>
    tpu.vector_store %arg10[%c0_27, %c0_28], %37 {strides = array<i32>} : memref<8x128xf32, #tpu.memory_space<vmem>>, vector<8x128xf32>,
    %c0_i32_29 = arith.constant 0 : i32
    %39 = arith.cmpi eq, %arg0, %c0_i32_29 : i32
    %40 = arith.extui %39 : i1 to i32
    %c0_i32_30 = arith.constant 0 : i32
    %41 = arith.cmpi ne, %40, %c0_i32_30 : i32
    scf.if %41 {
      %c0_31 = arith.constant 0 : index
      %c0_32 = arith.constant 0 : index
      %42 = vector.load %arg6[%c0_31, %c0_32] : memref<8x128xf32, #tpu.memory_space<vmem>>, vector<8x128xf32>
      %43 = vector.shape_cast %42 : vector<8x128xf32> to vector<1x8x128xf32>
      %cst_33 = arith.constant dense<0.000000e+00> : vector<1xf32>
      %44 = vector.multi_reduction <add>, %43, %cst_33 [1, 2] : vector<1x8x128xf32> to vector<1xf32>
      %45 = vector.shape_cast %44 : vector<1xf32> to vector<1x1x1xf32>
      %46 = vector.extract %45[0, 0, 0] : f32 from vector<1x1x1xf32>
      %c0_34 = arith.constant 0 : index
      %c0_35 = arith.constant 0 : index
      %47 = vector.load %arg7[%c0_34, %c0_35] : memref<8x128xf32, #tpu.memory_space<vmem>>, vector<8x128xf32>
      %48 = vector.shape_cast %47 : vector<8x128xf32> to vector<1x8x128xf32>
      %cst_36 = arith.constant dense<0.000000e+00> : vector<1xf32>
      %49 = vector.multi_reduction <add>, %48, %cst_36 [1, 2] : vector<1x8x128xf32> to vector<1xf32>
      %50 = vector.shape_cast %49 : vector<1xf32> to vector<1x1x1xf32>
      %51 = vector.extract %50[0, 0, 0] : f32 from vector<1x1x1xf32>
      %c0_37 = arith.constant 0 : index
      %c0_38 = arith.constant 0 : index
      %52 = vector.load %arg8[%c0_37, %c0_38] : memref<8x128xf32, #tpu.memory_space<vmem>>, vector<8x128xf32>
      %53 = vector.shape_cast %52 : vector<8x128xf32> to vector<1x8x128xf32>
      %cst_39 = arith.constant dense<0.000000e+00> : vector<1xf32>
      %54 = vector.multi_reduction <add>, %53, %cst_39 [1, 2] : vector<1x8x128xf32> to vector<1xf32>
      %55 = vector.shape_cast %54 : vector<1xf32> to vector<1x1x1xf32>
      %56 = vector.extract %55[0, 0, 0] : f32 from vector<1x1x1xf32>
      %c0_40 = arith.constant 0 : index
      %c0_41 = arith.constant 0 : index
      %57 = vector.load %arg9[%c0_40, %c0_41] : memref<8x128xf32, #tpu.memory_space<vmem>>, vector<8x128xf32>
      %58 = vector.shape_cast %57 : vector<8x128xf32> to vector<1x8x128xf32>
      %cst_42 = arith.constant dense<0.000000e+00> : vector<1xf32>
      %59 = vector.multi_reduction <add>, %58, %cst_42 [1, 2] : vector<1x8x128xf32> to vector<1xf32>
      %60 = vector.shape_cast %59 : vector<1xf32> to vector<1x1x1xf32>
      %61 = vector.extract %60[0, 0, 0] : f32 from vector<1x1x1xf32>
      %c0_43 = arith.constant 0 : index
      %c0_44 = arith.constant 0 : index
      %62 = vector.load %arg10[%c0_43, %c0_44] : memref<8x128xf32, #tpu.memory_space<vmem>>, vector<8x128xf32>
      %63 = vector.shape_cast %62 : vector<8x128xf32> to vector<1x8x128xf32>
      %cst_45 = arith.constant dense<0.000000e+00> : vector<1xf32>
      %64 = vector.multi_reduction <add>, %63, %cst_45 [1, 2] : vector<1x8x128xf32> to vector<1xf32>
      %65 = vector.shape_cast %64 : vector<1xf32> to vector<1x1x1xf32>
      %66 = vector.extract %65[0, 0, 0] : f32 from vector<1x1x1xf32>
      %c0_46 = arith.constant 0 : index
      %67 = memref.load %arg1[%c0_46] : memref<1xi32, #tpu.memory_space<smem>>
      %68 = arith.sitofp %67 : i32 to f32
      %cst_47 = arith.constant 1.000000e+00 : f32
      %69 = arith.divf %cst_47, %68 : f32
      %cst_48 = arith.constant 1.000000e+00 : f32
      %70 = arith.subf %68, %cst_48 : f32
      %cst_49 = arith.constant 1.000000e+00 : f32
      %71 = arith.divf %cst_49, %70 : f32
      %72 = arith.mulf %46, %46 : f32
      %73 = arith.mulf %72, %69 : f32
      %74 = arith.subf %56, %73 : f32
      %75 = arith.mulf %51, %51 : f32
      %76 = arith.mulf %75, %69 : f32
      %77 = arith.subf %61, %76 : f32
      %78 = arith.mulf %46, %51 : f32
      %79 = arith.mulf %78, %69 : f32
      %80 = arith.subf %66, %79 : f32
      %81 = arith.mulf %74, %71 : f32
      %82 = arith.mulf %77, %71 : f32
      %83 = math.sqrt %81 : f32
      %84 = math.sqrt %82 : f32
      %85 = math.sqrt %74 : f32
      %86 = math.sqrt %77 : f32
      %87 = arith.mulf %85, %86 : f32
      %88 = arith.divf %80, %87 : f32
      %89 = arith.subf %51, %46 : f32
      %90 = arith.mulf %89, %69 : f32
      %91 = arith.subf %4, %3 : f32
      %92 = arith.addf %90, %91 : f32
      %cst_50 = arith.constant 2.000000e+00 : f32
      %93 = arith.mulf %cst_50, %88 : f32
      %94 = arith.mulf %93, %84 : f32
      %95 = arith.mulf %94, %83 : f32
      %96 = arith.addf %82, %81 : f32
      %97 = arith.mulf %92, %92 : f32
      %98 = arith.addf %96, %97 : f32
      %99 = arith.divf %95, %98 : f32
      %cst_51 = arith.constant 1.000000e+00 : f32
      %100 = arith.subf %cst_51, %99 : f32
      %101 = vector.broadcast %100 : f32 to vector<1x1xf32>
      %c0_52 = arith.constant 0 : index
      %c0_53 = arith.constant 0 : index
      %102 = vector.load %arg5[%c0_52, %c0_53] : memref<1x1xf32, #tpu.memory_space<vmem>>, vector<1x1xf32>
      tpu.vector_store %arg5[%c0_52, %c0_53], %101 {strides = array<i32>} : memref<1x1xf32, #tpu.memory_space<vmem>>, vector<1x1xf32>,
    } else {
    }
    return
  }
  func.func @transform_0(%arg0: i32, %arg1: memref<1xi32, #tpu.memory_space<smem>>) -> i32 {
    %c0_i32 = arith.constant 0 : i32
    %c0_i32_0 = arith.constant 0 : i32
    return %c0_i32 : i32
  }
  func.func @transform_1(%arg0: i32, %arg1: memref<1xi32, #tpu.memory_space<smem>>) -> (i32, i32) {
    %c0_i32 = arith.constant 0 : i32
    %c0_i32_0 = arith.constant 0 : i32
    return %arg0, %c0_i32 : i32, i32
  }
  func.func @transform_2(%arg0: i32, %arg1: memref<1xi32, #tpu.memory_space<smem>>) -> (i32, i32) {
    %c0_i32 = arith.constant 0 : i32
    %c0_i32_0 = arith.constant 0 : i32
    return %arg0, %c0_i32 : i32, i32
  }
  func.func @transform_3(%arg0: i32, %arg1: memref<1xi32, #tpu.memory_space<smem>>) -> (i32, i32) {
    %c0_i32 = arith.constant 0 : i32
    %c0_i32_0 = arith.constant 0 : i32
    %c0_i32_1 = arith.constant 0 : i32
    return %c0_i32, %c0_i32_0 : i32, i32
  }
}

</mosaic_0001>

<llo_original>
// kernel: tpu_custom_call.1
$region0: #{tpu_custom_call.1}
  #allocation0 [shape = 'u32[]', space=smem, size = 0x4, offset = 0x4, fixed_abs, tag = 'smem constant byte address 0x4 - core index']
  #allocation1 [shape = 'u32[144,128]{1,0:T(1,128)}', space=vmem, size = 0x12000, scoped, tag = 'internal scratch']
  #allocation2 [shape = 'f32[8,128]{1,0:T(8,128)}', space=vmem, size = 0x1000, scoped, tag = 'scratch operand']
  #allocation3 [shape = 'f32[8,128]{1,0:T(8,128)}', space=vmem, size = 0x1000, scoped, tag = 'scratch operand']
  #allocation4 [shape = 'f32[8,128]{1,0:T(8,128)}', space=vmem, size = 0x1000, scoped, tag = 'scratch operand']
  #allocation5 [shape = 'f32[8,128]{1,0:T(8,128)}', space=vmem, size = 0x1000, scoped, tag = 'scratch operand']
  #allocation6 [shape = 'f32[8,128]{1,0:T(8,128)}', space=vmem, size = 0x1000, scoped, tag = 'scratch operand']
  #allocation7 [shape = 's32[1]{0}', space=sflag, size = 0x4, scoped, tag = 'scoped memory for tpu_custom_call.1']
  #allocation8 [shape = 's32[1]{0:T(128)S(6)}', space=smem, size = 0x200, scoped, tag = 'prefetched SMEM operand 0']
  %s0 = inlined_call_operand.<no memory space> [shape: s32[1], index: 0, kind: input, shape index: {}]
  %s1 = inlined_call_operand.vmem [shape: f32[2], index: 1, kind: input, shape index: {}]
  %s2 = inlined_call_operand.hbm [shape: f32[8,128], index: 2, kind: input, shape index: {}]
  %s3 = inlined_call_operand.vmem [shape: f32[8,128], index: 3, kind: input, shape index: {}]
  %s4 = inlined_call_operand.hbm [shape: f32[1,1], index: 4, kind: output, shape index: {}]
  %s5 = sld [smem:[#allocation0]]
  $region38: #{tpu_custom_call.1} parent=0
    _
  %s7 = ssub.s32 1, %s5
  %s8 = scalar_select 0, %s7, %s5
  %9 = sst [smem:[#allocation8]] %s0
  $region1: #{tpu_custom_call.1} parent=0
    #allocation9 [shape = 'u8[512]{0}', space=smem, size = 0x200, scoped, tag = 'input window, operand 1, single buffered']
    #allocation10 [shape = 's32[1]{0}', space=sflag, size = 0x4, scoped, tag = 'scoped memory for tpu_custom_call.1']
    #allocation11 [shape = 's32[1]{0}', space=sflag, size = 0x4, scoped, tag = 'scoped memory for tpu_custom_call.1']
    #allocation12 [shape = 's32[1]{0}', space=sflag, size = 0x4, scoped, tag = 'scoped memory for tpu_custom_call.1']
    #allocation13 [shape = 'u8[4096]{0}', space=vmem, size = 0x1000, scoped, tag = 'input window, operand 2, single buffered']
    #allocation14 [shape = 'u8[512]{0}', space=vmem, size = 0x400, scoped, tag = 'output window, operand 0, single buffered']
    %10 = vsyncpa [#allocation12], 0
    %11 = vsyncpa [#allocation10], 0
    %12 = vsyncpa [#allocation11], 0
    // Predicated region
    $region2: #{tpu_custom_call.1} parent=1 // pred_check
      _
    $region3: #{tpu_custom_call.1} parent=1 // pred_check_branch
      %14 = sbr.rel (0) target = $region5
    $region4: #{tpu_custom_call.1} parent=1 // pred_region
      %s16 = ssub.s32 16, 16
      %17 = vsyncadd [#allocation12], %s16
      %s19 = sshll.u32 %s1, 4
      %s20 = int_to_ptr.vmem [resolvable:$true] %s19
      %22 = dma.vmem_to_smem %s20, 16, [#allocation9], [#allocation12]
    $region5: #{tpu_custom_call.1} parent=1 // pred_fallthru
      _
    // Predicated region
    $region6: #{tpu_custom_call.1} parent=1 // pred_check
      _
    $region7: #{tpu_custom_call.1} parent=1 // pred_check_branch
      %24 = sbr.rel (0) target = $region9
    $region8: #{tpu_custom_call.1} parent=1 // pred_region
      %s26 = ssub.s32 128, 128
      %27 = vsyncadd [#allocation10], %s26
      %s29 = sshll.u32 [#allocation13], 4
      %s30 = int_to_ptr.vmem [resolvable:$true] %s29
      %32 = dma.hbm_to_vmem [thread:$0]  %s2, 128, %s30, [#allocation10]
    $region9: #{tpu_custom_call.1} parent=1 // pred_fallthru
      _
    // Predicated region
    $region10: #{tpu_custom_call.1} parent=1 // pred_check
      _
    $region11: #{tpu_custom_call.1} parent=1 // pred_check_branch
      %34 = sbr.rel (0) target = $region13
    $region12: #{tpu_custom_call.1} parent=1 // pred_region
      _
    $region13: #{tpu_custom_call.1} parent=1 // pred_fallthru
      _
    // Predicated region
    $region14: #{tpu_custom_call.1} parent=1 // pred_check
      _
    $region15: #{tpu_custom_call.1} parent=1 // pred_check_branch
      %36 = sbr.rel (0) target = $region17
    $region16: #{tpu_custom_call.1} parent=1 // pred_region
      %37 = dma.done [#allocation12], 16
    $region17: #{tpu_custom_call.1} parent=1 // pred_fallthru
      _
    // Predicated region
    $region18: #{tpu_custom_call.1} parent=1 // pred_check
      _
    $region19: #{tpu_custom_call.1} parent=1 // pred_check_branch
      %39 = sbr.rel (0) target = $region21
    $region20: #{tpu_custom_call.1} parent=1 // pred_region
      %40 = dma.done [#allocation10], 128
    $region21: #{tpu_custom_call.1} parent=1 // pred_fallthru
      _
    %41 = sfence
    %p42 = scmp.eq.s32.totalorder 0, 0
    // Predicated region
    $region22: #{tpu_custom_call.1} parent=1 // pred_check
      %p43 = pneg %p42
    $region23: #{tpu_custom_call.1} parent=1 // pred_check_branch
      %45 = sbr.rel (%p43) target = $region25
    $region24: #{tpu_custom_call.1} parent=1 // pred_region
      %46 = vst [vmem:[#allocation2] sm:$0xff] 0.0
      %47 = vst [vmem:[#allocation3] sm:$0xff] 0.0
      %48 = vst [vmem:[#allocation4] sm:$0xff] 0.0
      %49 = vst [vmem:[#allocation5] sm:$0xff] 0.0
      %50 = vst [vmem:[#allocation6] sm:$0xff] 0.0
    $region25: #{tpu_custom_call.1} parent=1 // pred_fallthru
      _
    %s51 = sld [smem:[#allocation9]]
    %s52 = sld [smem:[#allocation9 + $0x1]]
    %v53 = vld [vmem:[#allocation13] sm:$0xff]
    %v54 = vstv %s51
    %v55 = vsub.f32 %v53, %v54
    %v56 = vld [vmem:[%s3] sm:$0xff]
    %v57 = vstv %s52
    %v58 = vsub.f32 %v56, %v57
    %v59 = vld [vmem:[#allocation2] sm:$0xff]
    %v60 = vadd.f32 %v55, 0.0
    %v61 = vadd.f32 %v59, %v60
    %62 = vst [vmem:[#allocation2] sm:$0xff] %v61
    %v63 = vld [vmem:[#allocation3] sm:$0xff]
    %v64 = vadd.f32 %v58, 0.0
    %v65 = vadd.f32 %v63, %v64
    %66 = vst [vmem:[#allocation3] sm:$0xff] %v65
    %v67 = vld [vmem:[#allocation4] sm:$0xff]
    %v68 = vmul.f32 %v55, %v55
    %v69 = vadd.f32 %v68, 0.0
    %v70 = vadd.f32 %v67, %v69
    %71 = vst [vmem:[#allocation4] sm:$0xff] %v70
    %v72 = vld [vmem:[#allocation5] sm:$0xff]
    %v73 = vmul.f32 %v58, %v58
    %v74 = vadd.f32 %v73, 0.0
    %v75 = vadd.f32 %v72, %v74
    %76 = vst [vmem:[#allocation5] sm:$0xff] %v75
    %v77 = vld [vmem:[#allocation6] sm:$0xff]
    %v78 = vmul.f32 %v55, %v58
    %v79 = vadd.f32 %v78, 0.0
    %v80 = vadd.f32 %v77, %v79
    %81 = vst [vmem:[#allocation6] sm:$0xff] %v80
    // Predicated region
    $region26: #{tpu_custom_call.1} parent=1 // pred_check
      %p82 = pneg %p42
    $region27: #{tpu_custom_call.1} parent=1 // pred_check_branch
      %84 = sbr.rel (%p82) target = $region29
    $region28: #{tpu_custom_call.1} parent=1 // pred_region
      %v85 = vld [vmem:[#allocation2] sm:$0xff]
      %86 = vadd.xlane.f32.xlu0 %v85
      %v87 = vpop.xlane.xlu0 %86
      %v88 = vrot.slane %v87, 4
      %v89 = vadd.f32 %v87, %v88
      %v90 = vrot.slane %v89, 2
      %v91 = vadd.f32 %v89, %v90
      %v92 = vrot.slane %v91, 1
      %v93 = vadd.f32 %v91, %v92
      %s94 = vtos %v93
      %v95 = vld [vmem:[#allocation3] sm:$0xff]
      %96 = vadd.xlane.f32.xlu0 %v95
      %v97 = vpop.xlane.xlu0 %96
      %v98 = vrot.slane %v97, 4
      %v99 = vadd.f32 %v97, %v98
      %v100 = vrot.slane %v99, 2
      %v101 = vadd.f32 %v99, %v100
      %v102 = vrot.slane %v101, 1
      %v103 = vadd.f32 %v101, %v102
      %s104 = vtos %v103
      %v105 = vld [vmem:[#allocation4] sm:$0xff]
      %106 = vadd.xlane.f32.xlu0 %v105
      %v107 = vpop.xlane.xlu0 %106
      %v108 = vrot.slane %v107, 4
      %v109 = vadd.f32 %v107, %v108
      %v110 = vrot.slane %v109, 2
      %v111 = vadd.f32 %v109, %v110
      %v112 = vrot.slane %v111, 1
      %v113 = vadd.f32 %v111, %v112
      %s114 = vtos %v113
      %v115 = vld [vmem:[#allocation5] sm:$0xff]
      %116 = vadd.xlane.f32.xlu0 %v115
      %v117 = vpop.xlane.xlu0 %116
      %v118 = vrot.slane %v117, 4
      %v119 = vadd.f32 %v117, %v118
      %v120 = vrot.slane %v119, 2
      %v121 = vadd.f32 %v119, %v120
      %v122 = vrot.slane %v121, 1
      %v123 = vadd.f32 %v121, %v122
      %s124 = vtos %v123
      %v125 = vld [vmem:[#allocation6] sm:$0xff]
      %126 = vadd.xlane.f32.xlu0 %v125
      %v127 = vpop.xlane.xlu0 %126
      %v128 = vrot.slane %v127, 4
      %v129 = vadd.f32 %v127, %v128
      %v130 = vrot.slane %v129, 2
      %v131 = vadd.f32 %v129, %v130
      %v132 = vrot.slane %v131, 1
      %v133 = vadd.f32 %v131, %v132
      %s134 = vtos %v133
      %s135 = sld [smem:[#allocation8]]
      %s136 = scvt.s32.f32 %s135
      %v137 = vstv %s136
      %v138 = vrcp.pop %v137
      %s139 = vtos %v138
      %s140 = ssub.f32 %s136, 1.0
      %v141 = vstv %s140
      %v142 = vrcp.pop %v141
      %s143 = vtos %v142
      %s144 = smul.f32 %s94, %s94
      %s145 = smul.f32 %s144, %s139
      %s146 = ssub.f32 %s114, %s145
      %s147 = smul.f32 %s104, %s104
      %s148 = smul.f32 %s147, %s139
      %s149 = ssub.f32 %s124, %s148
      %s150 = smul.f32 %s94, %s104
      %s151 = smul.f32 %s150, %s139
      %s152 = ssub.f32 %s134, %s151
      %s153 = smul.f32 %s146, %s143
      %s154 = smul.f32 %s149, %s143
      %v155 = vstv %s153
      %v156 = vrsqrt.pop %v155
      %v157 = vmul.f32 %v155, %v156
      %vm158 = vcmp.eq.f32.partialorder %v155, inf
      %v159 = vsel %vm158, %v155, %v157
      %vm160 = vcmp.eq.f32.partialorder %v155, 0.0
      %v161 = vand.u32 %v155, 2147483648
      %v162 = vsel %vm160, %v161, %v159
      %s163 = vtos %v162
      %v164 = vstv %s154
      %v165 = vrsqrt.pop %v164
      %v166 = vmul.f32 %v164, %v165
      %vm167 = vcmp.eq.f32.partialorder %v164, inf
      %v168 = vsel %vm167, %v164, %v166
      %vm169 = vcmp.eq.f32.partialorder %v164, 0.0
      %v170 = vand.u32 %v164, 2147483648
      %v171 = vsel %vm169, %v170, %v168
      %s172 = vtos %v171
      %v173 = vstv %s146
      %v174 = vrsqrt.pop %v173
      %v175 = vmul.f32 %v173, %v174
      %vm176 = vcmp.eq.f32.partialorder %v173, inf
      %v177 = vsel %vm176, %v173, %v175
      %vm178 = vcmp.eq.f32.partialorder %v173, 0.0
      %v179 = vand.u32 %v173, 2147483648
      %v180 = vsel %vm178, %v179, %v177
      %s181 = vtos %v180
      %v182 = vstv %s149
      %v183 = vrsqrt.pop %v182
      %v184 = vmul.f32 %v182, %v183
      %vm185 = vcmp.eq.f32.partialorder %v182, inf
      %v186 = vsel %vm185, %v182, %v184
      %vm187 = vcmp.eq.f32.partialorder %v182, 0.0
      %v188 = vand.u32 %v182, 2147483648
      %v189 = vsel %vm187, %v188, %v186
      %s190 = vtos %v189
      %s191 = smul.f32 %s181, %s190
      %v192 = vstv %s191
      %v193 = vrcp.pop %v192
      %s194 = vtos %v193
      %s195 = smul.f32 %s152, %s194
      %s196 = ssub.f32 %s104, %s94
      %s197 = smul.f32 %s196, %s139
      %s198 = ssub.f32 %s52, %s51
      %s199 = sadd.f32 %s197, %s198
      %s200 = smul.f32 %s195, 2.0
      %s201 = smul.f32 %s200, %s172
      %s202 = smul.f32 %s201, %s163
      %s203 = sadd.f32 %s154, %s153
      %s204 = smul.f32 %s199, %s199
      %s205 = sadd.f32 %s203, %s204
      %v206 = vstv %s205
      %v207 = vrcp.pop %v206
      %s208 = vtos %v207
      %s209 = smul.f32 %s202, %s208
      %s210 = ssub.f32 1.0, %s209
      %v211 = vstv %s210
      %vm212 = vcmask 0
      %213 = vst.msk [vmem:[#allocation14] sm:$0x1] %vm212, %v211
    $region29: #{tpu_custom_call.1} parent=1 // pred_fallthru
      _
    // Predicated region
    $region30: #{tpu_custom_call.1} parent=1 // pred_check
      _
    $region31: #{tpu_custom_call.1} parent=1 // pred_check_branch
      %215 = sbr.rel (0) target = $region33
    $region32: #{tpu_custom_call.1} parent=1 // pred_region
      %s217 = ssub.s32 16, 16
      %218 = vsyncadd [#allocation11], %s217
      %s220 = sshll.u32 [#allocation14], 4
      %s221 = int_to_ptr.vmem [resolvable:$true] %s220
      %223 = dma.vmem_to_hbm [thread:$0]  %s221, 16, %s4, [#allocation11]
    $region33: #{tpu_custom_call.1} parent=1 // pred_fallthru
      _
    // Predicated region
    $region34: #{tpu_custom_call.1} parent=1 // pred_check
      _
    $region35: #{tpu_custom_call.1} parent=1 // pred_check_branch
      %225 = sbr.rel (0) target = $region37
    $region36: #{tpu_custom_call.1} parent=1 // pred_region
      %226 = dma.done [#allocation11], 16
    $region37: #{tpu_custom_call.1} parent=1 // pred_fallthru
      _
    %227 = vsyncpa [#allocation10], 1
    %228 = vsyncpa [#allocation11], 1
    %229 = vsyncpa [#allocation12], 1

</llo_original>
